<compile_context>
chip_gen: v7x
topology: tpu7x:2x2x1
jax: 0.10.0
libtpu: 0.0.40
codegen_flags: <defaults>
</compile_context>

<pallas_src>
import functools

import jax
import jax.numpy as jnp
from jax.experimental import pallas as pl
from jax.experimental.pallas import tpu as pltpu


def _stn_kernel(theta_ref, x_ref, o_ref, *, H, W, tile_p, matmul_dtype):
    """theta_ref: (1,) f32 in SMEM; x_ref: (B, H*W) f32; o_ref: (B, tile_p) f32."""
    HW = H * W
    Hf = jnp.float32(H)
    Wf = jnp.float32(W)
    j = pl.program_id(0)

    # Scalar theta from SMEM -> (1,1) splat so cos/sin run on the vector path.
    t = jnp.full((1, 1), theta_ref[0], dtype=jnp.float32)
    cos_t = jnp.cos(t)
    sin_t = jnp.sin(t)

    # Output flat pixel indices handled by this tile.
    p_i = j * tile_p + jax.lax.broadcasted_iota(jnp.int32, (1, tile_p), 1)
    pf = p_i.astype(jnp.float32)
    # Float row/col split (exact for H*W < 2^24, i.e. any realistic image).
    row = jnp.floor(pf / Wf)
    col = pf - row * Wf

    # F.affine_grid base grid, align_corners=False (pixel-center normalized).
    gx = (2.0 * col + 1.0) / Wf - 1.0          # x <-> width (cols)
    gy = (2.0 * row + 1.0) / Hf - 1.0          # y <-> height (rows)

    # theta = [[cos, -sin, 0], [sin, cos, 0]]
    sx = cos_t * gx - sin_t * gy               # (1, tile_p)
    sy = sin_t * gx + cos_t * gy

    # F.grid_sample unnormalization, align_corners=False.
    ix = ((sx + 1.0) * Wf - 1.0) * 0.5
    iy = ((sy + 1.0) * Hf - 1.0) * 0.5

    x0f = jnp.floor(ix)
    y0f = jnp.floor(iy)
    fx = ix - x0f
    fy = iy - y0f
    x0 = x0f.astype(jnp.int32)
    y0 = y0f.astype(jnp.int32)

    def masked(yc, xc, wgt):
        # padding_mode='zeros': out-of-bounds corners contribute nothing.
        valid = (xc >= 0) & (xc < W) & (yc >= 0) & (yc < H)
        return jnp.where(valid, wgt, 0.0)

    w00 = masked(y0,     x0,     (1.0 - fx) * (1.0 - fy))
    w01 = masked(y0,     x0 + 1, fx * (1.0 - fy))
    w10 = masked(y0 + 1, x0,     (1.0 - fx) * fy)
    w11 = masked(y0 + 1, x0 + 1, fx * fy)

    # Flat source index of the (y0, x0) corner, wrapped into [0, HW).  The wrap
    # only matters for columns whose +1/+W neighbour is the valid corner (those
    # land exactly right after the roll); columns with all four corners invalid
    # carry zero weight, so their wrapped position is irrelevant.
    f00 = y0 * W + x0
    f00 = jnp.where(f00 < 0, f00 + HW, f00)
    f00 = jnp.where(f00 >= HW, f00 - HW, f00)

    # One iota compare builds the (y0, x0) one-hot (VALU); the other three
    # corners are XLU rolls of it along the source axis: flat index +1, +W, +W+1.
    q = jax.lax.broadcasted_iota(jnp.int32, (HW, tile_p), 0)
    oh = jnp.where(q == f00, jnp.float32(1.0), jnp.float32(0.0))   # (HW, tile_p)

    m = (oh * w00
         + pltpu.roll(oh, 1, 0) * w01
         + pltpu.roll(oh, W, 0) * w10
         + pltpu.roll(oh, W + 1, 0) * w11)

    # out[b, p] = sum_q x[b, q] * m[q, p]   (one MXU matmul for all batch rows).
    lhs = x_ref[...].astype(matmul_dtype)
    o_ref[...] = jnp.dot(lhs, m.astype(matmul_dtype),
                         preferred_element_type=jnp.float32).astype(o_ref.dtype)


def stn_forward(x, theta, w, h, *, tile_p=512, matmul_dtype=jnp.float32):
    """Pallas equivalent of STN.forward. x: (B, w, h) f32, theta: (1,) f32."""
    B = x.shape[0]
    H, W = w, h                      # rows = module w, cols = module h
    HW = H * W

    # Output-pixel tile: keep it lane-dense and evenly dividing HW.
    tile_p = max(1, min(tile_p, HW))
    while HW % tile_p:
        tile_p //= 2
    grid = (HW // tile_p,)

    x_flat = x.reshape(B, HW).astype(jnp.float32)
    theta1 = theta.reshape(1).astype(jnp.float32)

    kernel = functools.partial(_stn_kernel, H=H, W=W, tile_p=tile_p,
                               matmul_dtype=matmul_dtype)
    out_flat = pl.pallas_call(
        kernel,
        out_shape=jax.ShapeDtypeStruct((B, HW), jnp.float32),
        grid=grid,
        in_specs=[
            pl.BlockSpec(memory_space=pltpu.MemorySpace.SMEM),   # scalar theta
            pl.BlockSpec((B, HW), lambda j: (0, 0)),             # whole image, resident
        ],
        out_specs=pl.BlockSpec((B, tile_p), lambda j: (0, j)),
        compiler_params=pltpu.CompilerParams(
            dimension_semantics=("parallel",)),                  # v7x: shard tiles over 2 TCs
    )(theta1, x_flat)

    x_reg = out_flat.reshape(B, 1, H, W)
    return x_reg, theta


def _ref_stn(x, theta_val, H, W):
    """Pure-JAX reference of affine_grid + bilinear grid_sample (align_corners=False)."""
    cos_t = jnp.cos(theta_val)
    sin_t = jnp.sin(theta_val)
    jj = jnp.arange(W, dtype=jnp.float32)
    ii = jnp.arange(H, dtype=jnp.float32)
    gx = (2.0 * jj + 1.0) / W - 1.0
    gy = (2.0 * ii + 1.0) / H - 1.0
    gx2, gy2 = jnp.meshgrid(gx, gy)                       # (H, W)
    sx = cos_t * gx2 - sin_t * gy2
    sy = sin_t * gx2 + cos_t * gy2
    ix = ((sx + 1.0) * W - 1.0) * 0.5
    iy = ((sy + 1.0) * H - 1.0) * 0.5
    x0 = jnp.floor(ix); y0 = jnp.floor(iy)
    fx = ix - x0; fy = iy - y0

    def gather(yc, xc, wgt):
        valid = (xc >= 0) & (xc <= W - 1) & (yc >= 0) & (yc <= H - 1)
        xi = jnp.clip(xc, 0, W - 1).astype(jnp.int32)
        yi = jnp.clip(yc, 0, H - 1).astype(jnp.int32)
        vals = x[:, yi, xi]                               # (B, H, W)
        return vals * (wgt * valid)[None]

    out = (gather(y0, x0, (1 - fx) * (1 - fy)) + gather(y0, x0 + 1, fx * (1 - fy))
           + gather(y0 + 1, x0, (1 - fx) * fy) + gather(y0 + 1, x0 + 1, fx * fy))
    return out.reshape(x.shape[0], 1, H, W)


if __name__ == "__main__":
    # data_shape = (b, w, h); non-square on purpose to catch any H/W mix-up.
    B, Wd, Hd = 2, 16, 24

    key = jax.random.PRNGKey(0)
    x = jax.random.normal(key, (B, Wd, Hd), dtype=jnp.float32)

    # Parameter init per nn.Module.__init__: theta = zeros(1).
    theta_param = jnp.zeros((1,), dtype=jnp.float32)

    # f32 path with a real multi-step grid (HW = 384 -> 3 tiles of 128 lanes).
    x_reg, theta_out = stn_forward(x, theta_param, Wd, Hd, tile_p=128)
    jax.block_until_ready(x_reg)
    assert x_reg.shape == (B, 1, Wd, Hd)
    # theta = 0 -> identity transform: output must reproduce the input.
    assert jnp.allclose(x_reg, x.reshape(B, 1, Wd, Hd), atol=1e-4, rtol=1e-4)
    assert jnp.allclose(theta_out, theta_param)

    # Nonzero angle vs. pure-JAX reference on the non-square image (f32 matmul).
    theta_test = jnp.array([0.3], dtype=jnp.float32)
    ref = _ref_stn(x, theta_test[0], Wd, Hd)
    x_reg2, _ = stn_forward(x, theta_test, Wd, Hd, tile_p=128)
    jax.block_until_ready(x_reg2)
    assert jnp.allclose(x_reg2, ref, atol=1e-4, rtol=1e-4)

    # bf16 MXU path (v6e/v7x): one-hot structure stays exact, bilinear weights
    # lose ~3 decimal digits, hence the looser tolerance.
    x_reg3, _ = stn_forward(x, theta_test, Wd, Hd, matmul_dtype=jnp.bfloat16)
    jax.block_until_ready(x_reg3)
    assert jnp.allclose(x_reg3, ref, atol=5e-2, rtol=5e-2)

    print("KERNEL_OK")
</pallas_src>

<mosaic_0001>
module attributes {stable_mosaic.version = 11 : i64} {
  func.func @_stn_kernel(%arg0: i32, %arg1: memref<1xf32, #tpu.memory_space<smem>>, %arg2: memref<2x384xf32, #tpu.memory_space<vmem>>, %arg3: memref<2x128xf32, #tpu.memory_space<vmem>>) attributes {dimension_semantics = [#tpu.dimension_semantics<parallel>], iteration_bounds = array<i64: 3>, scalar_prefetch = 0 : i64, scratch_operands = 0 : i64, tpu.core_type = #tpu.core_type<tc>, window_params = [{transform_indices = @transform_0, window_bounds = array<i64: 1>}, {pipeline_mode = #tpu.pipeline_mode<synchronous>, transform_indices = @transform_1, window_bounds = array<i64: 2, 384>}, {transform_indices = @transform_2, window_bounds = array<i64: 2, 128>}]} {
    %c0 = arith.constant 0 : index
    %0 = memref.load %arg1[%c0] : memref<1xf32, #tpu.memory_space<smem>>
    %1 = vector.broadcast %0 : f32 to vector<1x1xf32>
    %2 = math.cos %1 : vector<1x1xf32>
    %3 = math.sin %1 : vector<1x1xf32>
    %c128_i32 = arith.constant 128 : i32
    %4 = arith.muli %arg0, %c128_i32 : i32
    %5 = tpu.iota {dimensions = array<i32: 1>} : vector<1x128xi32>
    %6 = vector.broadcast %4 : i32 to vector<1x128xi32>
    %7 = arith.addi %6, %5 : vector<1x128xi32>
    %8 = arith.sitofp %7 : vector<1x128xi32> to vector<1x128xf32>
    %cst = arith.constant 2.400000e+01 : f32
    %9 = vector.broadcast %cst : f32 to vector<1x128xf32>
    %10 = arith.divf %8, %9 : vector<1x128xf32>
    %11 = math.floor %10 : vector<1x128xf32>
    %cst_0 = arith.constant 2.400000e+01 : f32
    %12 = vector.broadcast %cst_0 : f32 to vector<1x128xf32>
    %13 = arith.mulf %11, %12 : vector<1x128xf32>
    %14 = arith.subf %8, %13 : vector<1x128xf32>
    %cst_1 = arith.constant 2.000000e+00 : f32
    %15 = vector.broadcast %cst_1 : f32 to vector<1x128xf32>
    %16 = arith.mulf %15, %14 : vector<1x128xf32>
    %cst_2 = arith.constant 1.000000e+00 : f32
    %17 = vector.broadcast %cst_2 : f32 to vector<1x128xf32>
    %18 = arith.addf %16, %17 : vector<1x128xf32>
    %cst_3 = arith.constant 2.400000e+01 : f32
    %19 = vector.broadcast %cst_3 : f32 to vector<1x128xf32>
    %20 = arith.divf %18, %19 : vector<1x128xf32>
    %cst_4 = arith.constant 1.000000e+00 : f32
    %21 = vector.broadcast %cst_4 : f32 to vector<1x128xf32>
    %22 = arith.subf %20, %21 : vector<1x128xf32>
    %cst_5 = arith.constant 2.000000e+00 : f32
    %23 = vector.broadcast %cst_5 : f32 to vector<1x128xf32>
    %24 = arith.mulf %23, %11 : vector<1x128xf32>
    %cst_6 = arith.constant 1.000000e+00 : f32
    %25 = vector.broadcast %cst_6 : f32 to vector<1x128xf32>
    %26 = arith.addf %24, %25 : vector<1x128xf32>
    %cst_7 = arith.constant 1.600000e+01 : f32
    %27 = vector.broadcast %cst_7 : f32 to vector<1x128xf32>
    %28 = arith.divf %26, %27 : vector<1x128xf32>
    %cst_8 = arith.constant 1.000000e+00 : f32
    %29 = vector.broadcast %cst_8 : f32 to vector<1x128xf32>
    %30 = arith.subf %28, %29 : vector<1x128xf32>
    %31 = vector.broadcast %2 : vector<1x1xf32> to vector<1x128xf32>
    %32 = arith.mulf %31, %22 : vector<1x128xf32>
    %33 = vector.broadcast %3 : vector<1x1xf32> to vector<1x128xf32>
    %34 = arith.mulf %33, %30 : vector<1x128xf32>
    %35 = arith.subf %32, %34 : vector<1x128xf32>
    %36 = vector.broadcast %3 : vector<1x1xf32> to vector<1x128xf32>
    %37 = arith.mulf %36, %22 : vector<1x128xf32>
    %38 = vector.broadcast %2 : vector<1x1xf32> to vector<1x128xf32>
    %39 = arith.mulf %38, %30 : vector<1x128xf32>
    %40 = arith.addf %37, %39 : vector<1x128xf32>
    %cst_9 = arith.constant 1.000000e+00 : f32
    %41 = vector.broadcast %cst_9 : f32 to vector<1x128xf32>
    %42 = arith.addf %35, %41 : vector<1x128xf32>
    %cst_10 = arith.constant 2.400000e+01 : f32
    %43 = vector.broadcast %cst_10 : f32 to vector<1x128xf32>
    %44 = arith.mulf %42, %43 : vector<1x128xf32>
    %cst_11 = arith.constant 1.000000e+00 : f32
    %45 = vector.broadcast %cst_11 : f32 to vector<1x128xf32>
    %46 = arith.subf %44, %45 : vector<1x128xf32>
    %cst_12 = arith.constant 5.000000e-01 : f32
    %47 = vector.broadcast %cst_12 : f32 to vector<1x128xf32>
    %48 = arith.mulf %46, %47 : vector<1x128xf32>
    %cst_13 = arith.constant 1.000000e+00 : f32
    %49 = vector.broadcast %cst_13 : f32 to vector<1x128xf32>
    %50 = arith.addf %40, %49 : vector<1x128xf32>
    %cst_14 = arith.constant 1.600000e+01 : f32
    %51 = vector.broadcast %cst_14 : f32 to vector<1x128xf32>
    %52 = arith.mulf %50, %51 : vector<1x128xf32>
    %cst_15 = arith.constant 1.000000e+00 : f32
    %53 = vector.broadcast %cst_15 : f32 to vector<1x128xf32>
    %54 = arith.subf %52, %53 : vector<1x128xf32>
    %cst_16 = arith.constant 5.000000e-01 : f32
    %55 = vector.broadcast %cst_16 : f32 to vector<1x128xf32>
    %56 = arith.mulf %54, %55 : vector<1x128xf32>
    %57 = math.floor %48 : vector<1x128xf32>
    %58 = math.floor %56 : vector<1x128xf32>
    %59 = arith.subf %48, %57 : vector<1x128xf32>
    %60 = arith.subf %56, %58 : vector<1x128xf32>
    %61 = arith.fptosi %57 : vector<1x128xf32> to vector<1x128xi32>
    %62 = arith.fptosi %58 : vector<1x128xf32> to vector<1x128xi32>
    %cst_17 = arith.constant 1.000000e+00 : f32
    %63 = vector.broadcast %cst_17 : f32 to vector<1x128xf32>
    %64 = arith.subf %63, %59 : vector<1x128xf32>
    %cst_18 = arith.constant 1.000000e+00 : f32
    %65 = vector.broadcast %cst_18 : f32 to vector<1x128xf32>
    %66 = arith.subf %65, %60 : vector<1x128xf32>
    %67 = arith.mulf %64, %66 : vector<1x128xf32>
    %c0_i32 = arith.constant 0 : i32
    %68 = vector.broadcast %c0_i32 : i32 to vector<1x128xi32>
    %69 = arith.cmpi sge, %61, %68 : vector<1x128xi32>
    %c24_i32 = arith.constant 24 : i32
    %70 = vector.broadcast %c24_i32 : i32 to vector<1x128xi32>
    %71 = arith.cmpi slt, %61, %70 : vector<1x128xi32>
    %72 = arith.andi %69, %71 : vector<1x128xi1>
    %c0_i32_19 = arith.constant 0 : i32
    %73 = vector.broadcast %c0_i32_19 : i32 to vector<1x128xi32>
    %74 = arith.cmpi sge, %62, %73 : vector<1x128xi32>
    %75 = arith.andi %72, %74 : vector<1x128xi1>
    %c16_i32 = arith.constant 16 : i32
    %76 = vector.broadcast %c16_i32 : i32 to vector<1x128xi32>
    %77 = arith.cmpi slt, %62, %76 : vector<1x128xi32>
    %78 = arith.andi %75, %77 : vector<1x128xi1>
    %cst_20 = arith.constant 0.000000e+00 : f32
    %79 = vector.broadcast %cst_20 : f32 to vector<1x128xf32>
    %80 = arith.select %78, %67, %79 : vector<1x128xi1>, vector<1x128xf32>
    %c1_i32 = arith.constant 1 : i32
    %81 = vector.broadcast %c1_i32 : i32 to vector<1x128xi32>
    %82 = arith.addi %61, %81 : vector<1x128xi32>
    %cst_21 = arith.constant 1.000000e+00 : f32
    %83 = vector.broadcast %cst_21 : f32 to vector<1x128xf32>
    %84 = arith.subf %83, %60 : vector<1x128xf32>
    %85 = arith.mulf %59, %84 : vector<1x128xf32>
    %c0_i32_22 = arith.constant 0 : i32
    %86 = vector.broadcast %c0_i32_22 : i32 to vector<1x128xi32>
    %87 = arith.cmpi sge, %82, %86 : vector<1x128xi32>
    %c24_i32_23 = arith.constant 24 : i32
    %88 = vector.broadcast %c24_i32_23 : i32 to vector<1x128xi32>
    %89 = arith.cmpi slt, %82, %88 : vector<1x128xi32>
    %90 = arith.andi %87, %89 : vector<1x128xi1>
    %c0_i32_24 = arith.constant 0 : i32
    %91 = vector.broadcast %c0_i32_24 : i32 to vector<1x128xi32>
    %92 = arith.cmpi sge, %62, %91 : vector<1x128xi32>
    %93 = arith.andi %90, %92 : vector<1x128xi1>
    %c16_i32_25 = arith.constant 16 : i32
    %94 = vector.broadcast %c16_i32_25 : i32 to vector<1x128xi32>
    %95 = arith.cmpi slt, %62, %94 : vector<1x128xi32>
    %96 = arith.andi %93, %95 : vector<1x128xi1>
    %cst_26 = arith.constant 0.000000e+00 : f32
    %97 = vector.broadcast %cst_26 : f32 to vector<1x128xf32>
    %98 = arith.select %96, %85, %97 : vector<1x128xi1>, vector<1x128xf32>
    %c1_i32_27 = arith.constant 1 : i32
    %99 = vector.broadcast %c1_i32_27 : i32 to vector<1x128xi32>
    %100 = arith.addi %62, %99 : vector<1x128xi32>
    %cst_28 = arith.constant 1.000000e+00 : f32
    %101 = vector.broadcast %cst_28 : f32 to vector<1x128xf32>
    %102 = arith.subf %101, %59 : vector<1x128xf32>
    %103 = arith.mulf %102, %60 : vector<1x128xf32>
    %c0_i32_29 = arith.constant 0 : i32
    %104 = vector.broadcast %c0_i32_29 : i32 to vector<1x128xi32>
    %105 = arith.cmpi sge, %61, %104 : vector<1x128xi32>
    %c24_i32_30 = arith.constant 24 : i32
    %106 = vector.broadcast %c24_i32_30 : i32 to vector<1x128xi32>
    %107 = arith.cmpi slt, %61, %106 : vector<1x128xi32>
    %108 = arith.andi %105, %107 : vector<1x128xi1>
    %c0_i32_31 = arith.constant 0 : i32
    %109 = vector.broadcast %c0_i32_31 : i32 to vector<1x128xi32>
    %110 = arith.cmpi sge, %100, %109 : vector<1x128xi32>
    %111 = arith.andi %108, %110 : vector<1x128xi1>
    %c16_i32_32 = arith.constant 16 : i32
    %112 = vector.broadcast %c16_i32_32 : i32 to vector<1x128xi32>
    %113 = arith.cmpi slt, %100, %112 : vector<1x128xi32>
    %114 = arith.andi %111, %113 : vector<1x128xi1>
    %cst_33 = arith.constant 0.000000e+00 : f32
    %115 = vector.broadcast %cst_33 : f32 to vector<1x128xf32>
    %116 = arith.select %114, %103, %115 : vector<1x128xi1>, vector<1x128xf32>
    %c1_i32_34 = arith.constant 1 : i32
    %117 = vector.broadcast %c1_i32_34 : i32 to vector<1x128xi32>
    %118 = arith.addi %62, %117 : vector<1x128xi32>
    %c1_i32_35 = arith.constant 1 : i32
    %119 = vector.broadcast %c1_i32_35 : i32 to vector<1x128xi32>
    %120 = arith.addi %61, %119 : vector<1x128xi32>
    %121 = arith.mulf %59, %60 : vector<1x128xf32>
    %c0_i32_36 = arith.constant 0 : i32
    %122 = vector.broadcast %c0_i32_36 : i32 to vector<1x128xi32>
    %123 = arith.cmpi sge, %120, %122 : vector<1x128xi32>
    %c24_i32_37 = arith.constant 24 : i32
    %124 = vector.broadcast %c24_i32_37 : i32 to vector<1x128xi32>
    %125 = arith.cmpi slt, %120, %124 : vector<1x128xi32>
    %126 = arith.andi %123, %125 : vector<1x128xi1>
    %c0_i32_38 = arith.constant 0 : i32
    %127 = vector.broadcast %c0_i32_38 : i32 to vector<1x128xi32>
    %128 = arith.cmpi sge, %118, %127 : vector<1x128xi32>
    %129 = arith.andi %126, %128 : vector<1x128xi1>
    %c16_i32_39 = arith.constant 16 : i32
    %130 = vector.broadcast %c16_i32_39 : i32 to vector<1x128xi32>
    %131 = arith.cmpi slt, %118, %130 : vector<1x128xi32>
    %132 = arith.andi %129, %131 : vector<1x128xi1>
    %cst_40 = arith.constant 0.000000e+00 : f32
    %133 = vector.broadcast %cst_40 : f32 to vector<1x128xf32>
    %134 = arith.select %132, %121, %133 : vector<1x128xi1>, vector<1x128xf32>
    %c24_i32_41 = arith.constant 24 : i32
    %135 = vector.broadcast %c24_i32_41 : i32 to vector<1x128xi32>
    %136 = arith.muli %62, %135 : vector<1x128xi32>
    %137 = arith.addi %136, %61 : vector<1x128xi32>
    %c0_i32_42 = arith.constant 0 : i32
    %138 = vector.broadcast %c0_i32_42 : i32 to vector<1x128xi32>
    %139 = arith.cmpi slt, %137, %138 : vector<1x128xi32>
    %c384_i32 = arith.constant 384 : i32
    %140 = vector.broadcast %c384_i32 : i32 to vector<1x128xi32>
    %141 = arith.addi %137, %140 : vector<1x128xi32>
    %142 = arith.select %139, %141, %137 : vector<1x128xi1>, vector<1x128xi32>
    %c384_i32_43 = arith.constant 384 : i32
    %143 = vector.broadcast %c384_i32_43 : i32 to vector<1x128xi32>
    %144 = arith.cmpi sge, %142, %143 : vector<1x128xi32>
    %c384_i32_44 = arith.constant 384 : i32
    %145 = vector.broadcast %c384_i32_44 : i32 to vector<1x128xi32>
    %146 = arith.subi %142, %145 : vector<1x128xi32>
    %147 = arith.select %144, %146, %142 : vector<1x128xi1>, vector<1x128xi32>
    %148 = tpu.iota {dimensions = array<i32: 0>} : vector<384x128xi32>
    %149 = vector.broadcast %147 : vector<1x128xi32> to vector<384x128xi32>
    %150 = arith.cmpi eq, %148, %149 : vector<384x128xi32>
    %cst_45 = arith.constant 1.000000e+00 : f32
    %cst_46 = arith.constant 0.000000e+00 : f32
    %151 = vector.broadcast %cst_45 : f32 to vector<384x128xf32>
    %152 = vector.broadcast %cst_46 : f32 to vector<384x128xf32>
    %153 = arith.select %150, %151, %152 : vector<384x128xi1>, vector<384x128xf32>
    %154 = vector.broadcast %80 : vector<1x128xf32> to vector<384x128xf32>
    %155 = arith.mulf %153, %154 : vector<384x128xf32>
    %c1_i32_47 = arith.constant 1 : i32
    %156 = tpu.dynamic_rotate %153 by %c1_i32_47 dim 0 : vector<384x128xf32>, i32 -> vector<384x128xf32>
    %157 = vector.broadcast %98 : vector<1x128xf32> to vector<384x128xf32>
    %158 = arith.mulf %156, %157 : vector<384x128xf32>
    %159 = arith.addf %155, %158 : vector<384x128xf32>
    %c24_i32_48 = arith.constant 24 : i32
    %160 = tpu.dynamic_rotate %153 by %c24_i32_48 dim 0 : vector<384x128xf32>, i32 -> vector<384x128xf32>
    %161 = vector.broadcast %116 : vector<1x128xf32> to vector<384x128xf32>
    %162 = arith.mulf %160, %161 : vector<384x128xf32>
    %163 = arith.addf %159, %162 : vector<384x128xf32>
    %c25_i32 = arith.constant 25 : i32
    %164 = tpu.dynamic_rotate %153 by %c25_i32 dim 0 : vector<384x128xf32>, i32 -> vector<384x128xf32>
    %165 = vector.broadcast %134 : vector<1x128xf32> to vector<384x128xf32>
    %166 = arith.mulf %164, %165 : vector<384x128xf32>
    %167 = arith.addf %163, %166 : vector<384x128xf32>
    %c0_49 = arith.constant 0 : index
    %c0_50 = arith.constant 0 : index
    %168 = vector.load %arg2[%c0_49, %c0_50] : memref<2x384xf32, #tpu.memory_space<vmem>>, vector<2x384xf32>
    %cst_51 = arith.constant dense<0.000000e+00> : vector<2x128xf32>
    %169 = tpu.matmul %168, %167, %cst_51 {dimension_numbers = #tpu.dot_dimension_numbers<[1], [0], [0], [1], [0, 0, 1, 1], [], []>} : vector<2x384xf32>, vector<384x128xf32>, vector<2x128xf32> -> vector<2x128xf32>
    %c0_52 = arith.constant 0 : index
    %c0_53 = arith.constant 0 : index
    %170 = vector.load %arg3[%c0_52, %c0_53] : memref<2x128xf32, #tpu.memory_space<vmem>>, vector<2x128xf32>
    tpu.vector_store %arg3[%c0_52, %c0_53], %169 {strides = array<i32>} : memref<2x128xf32, #tpu.memory_space<vmem>>, vector<2x128xf32>,
    return
  }
  func.func @transform_0(%arg0: i32) -> i32 {
    %c0_i32 = arith.constant 0 : i32
    %c0_i32_0 = arith.constant 0 : i32
    return %c0_i32 : i32
  }
  func.func @transform_1(%arg0: i32) -> (i32, i32) {
    %c0_i32 = arith.constant 0 : i32
    %c0_i32_0 = arith.constant 0 : i32
    %c0_i32_1 = arith.constant 0 : i32
    return %c0_i32, %c0_i32_0 : i32, i32
  }
  func.func @transform_2(%arg0: i32) -> (i32, i32) {
    %c0_i32 = arith.constant 0 : i32
    %c0_i32_0 = arith.constant 0 : i32
    return %c0_i32, %arg0 : i32, i32
  }
}

</mosaic_0001>

<llo_original>
// kernel: tpu_custom_call.1
$region0: #{tpu_custom_call.1}
  #allocation0 [shape = 'u32[]', space=smem, size = 0x4, offset = 0x4, fixed_abs, tag = 'smem constant byte address 0x4 - core index']
  #allocation1 [shape = 'u32[144,128]{1,0:T(1,128)}', space=vmem, size = 0x12000, scoped, tag = 'internal scratch']
  #allocation2 [shape = 'f32[1]{0:T(128)S(6)}', space=smem, size = 0x200, scoped, tag = 'scoped memory for tpu_custom_call.1']
  %s0 = inlined_call_operand.<no memory space> [shape: f32[1], index: 0, kind: input, shape index: {}]
  %s1 = inlined_call_operand.hbm [shape: f32[2,384], index: 1, kind: input, shape index: {}]
  %s2 = inlined_call_operand.hbm [shape: f32[2,384], index: 2, kind: output, shape index: {}]
  %s3 = sld [smem:[#allocation0]]
  $region45: #{tpu_custom_call.1} parent=0
    _
  %s5 = ssub.s32 1, %s3
  %s6 = scalar_select 0, %s5, %s3
  %7 = sst [smem:[#allocation2]] %s0
  $region1: #{tpu_custom_call.1} parent=0
    #allocation3 [shape = 'u8[3072]{0}', space=vmem, size = 0xc00, scoped, tag = 'input window, operand 1, single buffered']
    #allocation4 [shape = 's32[2]{0}', space=sflag, size = 0x8, scoped, tag = 'scoped memory for tpu_custom_call.1']
    #allocation5 [shape = 's32[2]{0}', space=sflag, size = 0x8, scoped, tag = 'scoped memory for tpu_custom_call.1']
    #allocation6 [shape = 'u8[2048]{0}', space=vmem, size = 0x800, scoped, tag = 'output window, operand 0']
    %8 = vsyncpa [#allocation4], 0
    %9 = vsyncpa [#allocation5], 0
    %s10 = scalar_lea.sflag [#allocation5], 1
    %11 = vsyncpa %s10, 0
    loop: start=0, step=1, limit=5
    $region2: #{tpu_custom_call.1} parent=1 // loop_pre_header
      _
    $region3: #{tpu_custom_call.1} parent=1 // loop_header
      %s13 = sphi 0, %s17
      %p14 = scmp.ge.s32.totalorder %s13, 5
      %s21 = sphi 0, %s21
      %s23 = sphi 0, %s21
      %s24 = sphi 0, %s23
      %s38 = sphi 0, %s24
      %s42 = sphi 0, %s42
      %s44 = sphi 0, %s42
      %s45 = sphi 0, %s44
      %s59 = sphi 0, %s45
      %s65 = sphi 0, %s67
      %s68 = sphi 0, %s65
      %s69 = sphi 0, %s68
      %s85 = sphi 0, %s69
    $region4: #{tpu_custom_call.1} parent=1 // loop_header_branch
      %16 = sbr.rel (%p14) target = $region8
    $region5: #{tpu_custom_call.1} parent=1 // loop_body
      %s18 = ssub.s32 %s13, 1
      %s19 = ssub.s32 %s13, 2
      %s20 = sadd.s32 %s13, 1
      %s22 = sadd.s32 %s21, 1
      %p25 = scmp.eq.s32.totalorder %s13, 2
      %p26 = scmp.ne.s32.totalorder %s21, %s23
      %p27 = scmp.eq.s32.totalorder %s13, 0
      %p28 = por %p26, %p27
      %p29 = scmp.ne.s32.totalorder %s21, %s23
      %p30 = scmp.eq.s32.totalorder %s18, 2
      %p31 = por %p29, %p30
      %p32 = scmp.ne.s32.totalorder %s23, %s24
      %p33 = scmp.eq.s32.totalorder %s18, 0
      %p34 = por %p32, %p33
      %p35 = scmp.ne.s32.totalorder %s23, %s24
      %p36 = scmp.eq.s32.totalorder %s19, 2
      %p37 = por %p35, %p36
      %p39 = scmp.ne.s32.totalorder %s24, %s38
      %p40 = scmp.eq.s32.totalorder %s19, 0
      %p41 = por %p39, %p40
      %s43 = sadd.s32 %s42, 1
      %p46 = scmp.eq.s32.totalorder %s13, 2
      %p47 = scmp.ne.s32.totalorder %s42, %s44
      %p48 = scmp.eq.s32.totalorder %s13, 0
      %p49 = por %p47, %p48
      %p50 = scmp.ne.s32.totalorder %s42, %s44
      %p51 = scmp.eq.s32.totalorder %s18, 2
      %p52 = por %p50, %p51
      %p53 = scmp.ne.s32.totalorder %s44, %s45
      %p54 = scmp.eq.s32.totalorder %s18, 0
      %p55 = por %p53, %p54
      %p56 = scmp.ne.s32.totalorder %s44, %s45
      %p57 = scmp.eq.s32.totalorder %s19, 2
      %p58 = por %p56, %p57
      %p60 = scmp.ne.s32.totalorder %s45, %s59
      %p61 = scmp.eq.s32.totalorder %s19, 0
      %p62 = por %p60, %p61
      %s63 = ssub.s32 %s13, %s20
      %p64 = scmp.eq.s32.totalorder %s63, 0
      %s66 = sadd.s32 %s65, 1
      %s67 = scalar_select %p64, %s65, %s66
      %p70 = pneg %p64
      %p71 = scmp.eq.s32.totalorder %s13, 2
      %p72 = por %p70, %p71
      %p73 = scmp.ne.s32.totalorder %s65, %s68
      %p74 = scmp.eq.s32.totalorder %s13, 0
      %p75 = por %p73, %p74
      %p76 = scmp.ne.s32.totalorder %s65, %s68
      %p77 = scmp.eq.s32.totalorder %s18, 2
      %p78 = por %p76, %p77
      %p79 = scmp.ne.s32.totalorder %s68, %s69
      %p80 = scmp.eq.s32.totalorder %s18, 0
      %p81 = por %p79, %p80
      %p82 = scmp.ne.s32.totalorder %s68, %s69
      %p83 = scmp.eq.s32.totalorder %s19, 2
      %p84 = por %p82, %p83
      %p86 = scmp.ne.s32.totalorder %s69, %s85
      %p87 = scmp.eq.s32.totalorder %s19, 0
      %p88 = por %p86, %p87
      %p89 = scmp.le.s32.totalorder 1, %s13
      %p90 = scmp.lt.s32.totalorder %s13, 4
      %p91 = pnand %p89, %p90
      %p92 = pneg %p91
      // Predicated region
      $region9: #{tpu_custom_call.1} parent=5 // pred_check
        _
      $region10: #{tpu_custom_call.1} parent=5 // pred_check_branch
        %94 = sbr.rel (%p91) target = $region12
      $region11: #{tpu_custom_call.1} parent=5 // pred_region
        %s95 = ssub.s32 %s13, 1
        // Predicated region
        $region13: #{tpu_custom_call.1} parent=11 // pred_check
          %p96 = pneg %p34
        $region14: #{tpu_custom_call.1} parent=11 // pred_check_branch
          %98 = sbr.rel (%p96) target = $region16
        $region15: #{tpu_custom_call.1} parent=11 // pred_region
          _
        $region16: #{tpu_custom_call.1} parent=11 // pred_fallthru
          _
        // Predicated region
        $region17: #{tpu_custom_call.1} parent=11 // pred_check
          %p99 = pneg %p55
        $region18: #{tpu_custom_call.1} parent=11 // pred_check_branch
          %101 = sbr.rel (%p99) target = $region20
        $region19: #{tpu_custom_call.1} parent=11 // pred_region
          %s103 = ssub.s32 96, 96
          %104 = vsyncadd [#allocation4], %s103
          %s106 = sshll.u32 [#allocation3], 4
          %s107 = int_to_ptr.vmem [resolvable:$true] %s106
          %109 = dma.hbm_to_vmem [thread:$0]  %s1, 96, %s107, [#allocation4]
        $region20: #{tpu_custom_call.1} parent=11 // pred_fallthru
          _
      $region12: #{tpu_custom_call.1} parent=5 // pred_fallthru
        _
      %p110 = scmp.lt.s32.totalorder %s13, 3
      // Predicated region
      $region21: #{tpu_custom_call.1} parent=5 // pred_check
        %p111 = pneg %p110
      $region22: #{tpu_custom_call.1} parent=5 // pred_check_branch
        %113 = sbr.rel (%p111) target = $region24
      $region23: #{tpu_custom_call.1} parent=5 // pred_region
        _
      $region24: #{tpu_custom_call.1} parent=5 // pred_fallthru
        _
      %p114 = scmp.le.s32.totalorder 1, %s13
      %p115 = scmp.lt.s32.totalorder %s13, 4
      %p116 = pnand %p114, %p115
      %p117 = pneg %p116
      // Predicated region
      $region25: #{tpu_custom_call.1} parent=5 // pred_check
        _
      $region26: #{tpu_custom_call.1} parent=5 // pred_check_branch
        %119 = sbr.rel (%p116) target = $region28
      $region27: #{tpu_custom_call.1} parent=5 // pred_region
        %s120 = ssub.s32 %s13, 1
        // Predicated region
        $region29: #{tpu_custom_call.1} parent=27 // pred_check
          %p121 = pneg %p55
        $region30: #{tpu_custom_call.1} parent=27 // pred_check_branch
          %123 = sbr.rel (%p121) target = $region32
        $region31: #{tpu_custom_call.1} parent=27 // pred_region
          %124 = dma.done [#allocation4], 96
        $region32: #{tpu_custom_call.1} parent=27 // pred_fallthru
          _
        %p125 = pneg %p34
        %p126 = pneg %p31
        %p127 = pneg %p55
        %p128 = pneg %p52
        %p129 = pneg %p81
        %p130 = pneg %p78
        %s131 = sand.u32 %s68, 1
        %s132 = scalar_lea.sflag [#allocation5], %s131
        %s133 = sand.u32 %s68, 1
        %s134 = smul.addr %s133, 2
        %s135 = scalar_lea.vmem [#allocation6], %s134
        %s136 = sld [smem:[#allocation2]]
        %v137 = vstv %s136
        %v138 = vand.u32 2147483647, %v137
        %vm139 = vcmp.le.f32.partialorder %v138, 0.7853982
        %vm140 = vcmp.lt.s32.totalorder %v137, 0
        %v141 = vand.u32 %v137, 2139095040
        %v142 = vshrl.u32 %v141, 23
        %v143 = vsub.s32 %v142, 127
        %v144 = vand.u32 2147483647, %v137
        %v145 = vand.u32 %v144, 8388607
        %v146 = vor.u32 %v145, 8388608
        %v147 = vsub.s32 0, %v146
        %v148 = vadd.s32 %v143, 1
        %vm149 = vcmp.gt.s32.totalorder %v148, 0
        %v150 = vsel %vm149, %v148, 0
        %v151 = vshrl.u32 %v150, 5
        %v152 = vand.u32 %v150, 31
        %v153 = vsub.s32 32, %v152
        %v154 = vshrl.u32 683565275, %v153
        %v155 = vshll.u32 683565275, %v152
        %v156 = vshrl.u32 2475754826, %v153
        %v157 = vor.u32 %v155, %v156
        %v158 = vshll.u32 2475754826, %v152
        %v159 = vshrl.u32 2131351028, %v153
        %v160 = vor.u32 %v158, %v159
        %v161 = vshll.u32 2131351028, %v152
        %v162 = vshrl.u32 2102212464, %v153
        %v163 = vor.u32 %v161, %v162
        %v164 = vshll.u32 2102212464, %v152
        %v165 = vshrl.u32 920167782, %v153
        %v166 = vor.u32 %v164, %v165
        %v167 = vshll.u32 920167782, %v152
        %v168 = vshrl.u32 1326507024, %v153
        %v169 = vor.u32 %v167, %v168
        %vm170 = vcmp.lt.s32.totalorder %v151, 1
        %vm171 = vcmp.lt.s32.totalorder %v151, 2
        %vm172 = vcmp.lt.s32.totalorder %v151, 3
        %vm173 = vcmp.lt.s32.totalorder %v151, 4
        %v174 = vsel %vm170, %v154, %v157
        %v175 = vsel %vm173, %v163, 2102212464
        %v176 = vsel %vm172, %v160, %v175
        %v177 = vsel %vm171, %v174, %v176
        %v178 = vsel %vm170, %v157, %v160
        %v179 = vsel %vm173, %v166, 920167782
        %v180 = vsel %vm172, %v163, %v179
        %v181 = vsel %vm171, %v178, %v180
        %v182 = vsel %vm170, %v160, %v163
        %v183 = vsel %vm173, %v169, 1326507024
        %v184 = vsel %vm172, %v166, %v183
        %v185 = vsel %vm171, %v182, %v184
        %v186 = vshll.u32 %v146, 8
        %v187 = vmul.u32.u64.compose %v186, %v185
        %v188 = vextract.low.u32 %v187
        %v189 = vextract.high.u32 %v187
        %v190 = vmul.u32.u64.compose %v186, %v181
        %v191 = vextract.low.u32 %v190
        %v192 = vextract.high.u32 %v190
        %v193 = vmul.u32 %v186, %v177
        %v194 = vadd.s32 %v189, %v191
        %vm195 = vc.u32 %v189, %v191
        %v196 = vadd.s32 %v192, 1
        %v197 = vsel %vm195, %v196, %v192
        %v198 = vadd.s32 %v193, %v197
        %v199 = vadd.s32 %v198, 536870912
        %v200 = vshrl.u32 %v199, 30
        %v201 = vshll.u32 %v200, 30
        %v202 = vsub.s32 %v198, %v201
        %vm203 = vcmp.lt.s32.totalorder %v202, 0
        %v204 = vsub.s32 0, %v202
        %v205 = vsel %vm203, %v204, %v202
        %v206 = vclz %v205
        %v207 = vsub.s32 %v206, 2
        %vm208 = vcmp.gt.s32.totalorder 0, %v207
        %v209 = vsel %vm208, 0, %v207
        %v210 = vsub.s32 32, %v209
        %v211 = vshll.u32 %v202, %v209
        %v212 = vshrl.u32 %v194, %v210
        %v213 = vor.u32 %v211, %v212
        %v214 = vsub.s32 4294967266, %v209
        %v215 = vadd.s32 %v214, 127
        %v216 = vshll.u32 %v215, 23
        %v217 = vor.u32 4788187, %v216
        %v218 = vand.u32 2147483647, %v217
        %v220 = vcvt.s32.f32 %v213
        %v221 = vmul.f32 %v220, %v218
        %v222 = vxor.u32 %v221, 2147483648
        %v223 = vsel %vm140, %v222, %v221
        %v224 = vsub.s32 4, %v200
        %v225 = vsel %vm140, %v224, %v200
        %v226 = vsel %vm139, %v137, %v223
        %v227 = vsel %vm139, 0, %v225
        %v228 = vcosq.f32.pop %v226
        %v229 = vsinq.f32.pop %v226
        %vm230 = vweird.f32 %v137
        %v231 = vand.u32 %v227, 3
        %vm232 = vcmp.lt.s32.totalorder %v231, 2
        %vm233 = vcmp.eq.s32.totalorder %v231, 0
        %v234 = vxor.u32 %v229, 2147483648
        %v235 = vsel %vm233, %v228, %v234
        %vm236 = vcmp.eq.s32.totalorder %v231, 2
        %v237 = vxor.u32 %v228, 2147483648
        %v238 = vsel %vm236, %v237, %v229
        %v239 = vsel %vm232, %v235, %v238
        %v240 = vsel %vm230, nan, %v239
        %v241 = vand.u32 2147483647, %v137
        %vm242 = vcmp.le.f32.partialorder %v241, 0.7853982
        %vm243 = vcmp.lt.s32.totalorder %v137, 0
        %v244 = vand.u32 %v137, 2139095040
        %v245 = vshrl.u32 %v244, 23
        %v246 = vsub.s32 %v245, 127
        %v247 = vand.u32 2147483647, %v137
        %v248 = vand.u32 %v247, 8388607
        %v249 = vor.u32 %v248, 8388608
        %v250 = vsub.s32 0, %v249
        %v251 = vadd.s32 %v246, 1
        %vm252 = vcmp.gt.s32.totalorder %v251, 0
        %v253 = vsel %vm252, %v251, 0
        %v254 = vshrl.u32 %v253, 5
        %v255 = vand.u32 %v253, 31
        %v256 = vsub.s32 32, %v255
        %v257 = vshrl.u32 683565275, %v256
        %v258 = vshll.u32 683565275, %v255
        %v259 = vshrl.u32 2475754826, %v256
        %v260 = vor.u32 %v258, %v259
        %v261 = vshll.u32 2475754826, %v255
        %v262 = vshrl.u32 2131351028, %v256
        %v263 = vor.u32 %v261, %v262
        %v264 = vshll.u32 2131351028, %v255
        %v265 = vshrl.u32 2102212464, %v256
        %v266 = vor.u32 %v264, %v265
        %v267 = vshll.u32 2102212464, %v255
        %v268 = vshrl.u32 920167782, %v256
        %v269 = vor.u32 %v267, %v268
        %v270 = vshll.u32 920167782, %v255
        %v271 = vshrl.u32 1326507024, %v256
        %v272 = vor.u32 %v270, %v271
        %vm273 = vcmp.lt.s32.totalorder %v254, 1
        %vm274 = vcmp.lt.s32.totalorder %v254, 2
        %vm275 = vcmp.lt.s32.totalorder %v254, 3
        %vm276 = vcmp.lt.s32.totalorder %v254, 4
        %v277 = vsel %vm273, %v257, %v260
        %v278 = vsel %vm276, %v266, 2102212464
        %v279 = vsel %vm275, %v263, %v278
        %v280 = vsel %vm274, %v277, %v279
        %v281 = vsel %vm273, %v260, %v263
        %v282 = vsel %vm276, %v269, 920167782
        %v283 = vsel %vm275, %v266, %v282
        %v284 = vsel %vm274, %v281, %v283
        %v285 = vsel %vm273, %v263, %v266
        %v286 = vsel %vm276, %v272, 1326507024
        %v287 = vsel %vm275, %v269, %v286
        %v288 = vsel %vm274, %v285, %v287
        %v289 = vshll.u32 %v249, 8
        %v290 = vmul.u32.u64.compose %v289, %v288
        %v291 = vextract.low.u32 %v290
        %v292 = vextract.high.u32 %v290
        %v293 = vmul.u32.u64.compose %v289, %v284
        %v294 = vextract.low.u32 %v293
        %v295 = vextract.high.u32 %v293
        %v296 = vmul.u32 %v289, %v280
        %v297 = vadd.s32 %v292, %v294
        %vm298 = vc.u32 %v292, %v294
        %v299 = vadd.s32 %v295, 1
        %v300 = vsel %vm298, %v299, %v295
        %v301 = vadd.s32 %v296, %v300
        %v302 = vadd.s32 %v301, 536870912
        %v303 = vshrl.u32 %v302, 30
        %v304 = vshll.u32 %v303, 30
        %v305 = vsub.s32 %v301, %v304
        %vm306 = vcmp.lt.s32.totalorder %v305, 0
        %v307 = vsub.s32 0, %v305
        %v308 = vsel %vm306, %v307, %v305
        %v309 = vclz %v308
        %v310 = vsub.s32 %v309, 2
        %vm311 = vcmp.gt.s32.totalorder 0, %v310
        %v312 = vsel %vm311, 0, %v310
        %v313 = vsub.s32 32, %v312
        %v314 = vshll.u32 %v305, %v312
        %v315 = vshrl.u32 %v297, %v313
        %v316 = vor.u32 %v314, %v315
        %v317 = vsub.s32 4294967266, %v312
        %v318 = vadd.s32 %v317, 127
        %v319 = vshll.u32 %v318, 23
        %v320 = vor.u32 4788187, %v319
        %v321 = vand.u32 2147483647, %v320
        %v323 = vcvt.s32.f32 %v316
        %v324 = vmul.f32 %v323, %v321
        %v325 = vxor.u32 %v324, 2147483648
        %v326 = vsel %vm243, %v325, %v324
        %v327 = vsub.s32 4, %v303
        %v328 = vsel %vm243, %v327, %v303
        %v329 = vsel %vm242, %v137, %v326
        %v330 = vsel %vm242, 0, %v328
        %v331 = vcosq.f32.pop %v329
        %v332 = vsinq.f32.pop %v329
        %vm333 = vweird.f32 %v137
        %v334 = vadd.s32 %v330, 3
        %v335 = vand.u32 %v334, 3
        %vm336 = vcmp.lt.s32.totalorder %v335, 2
        %vm337 = vcmp.eq.s32.totalorder %v335, 0
        %v338 = vxor.u32 %v332, 2147483648
        %v339 = vsel %vm337, %v331, %v338
        %vm340 = vcmp.eq.s32.totalorder %v335, 2
        %v341 = vxor.u32 %v331, 2147483648
        %v342 = vsel %vm340, %v341, %v332
        %v343 = vsel %vm336, %v339, %v342
        %v344 = vsel %vm333, nan, %v343
        %s345 = smul.u32 %s18, 128
        %v346 = vlaneseq
        %v347 = vand.u32 %v346, 127
        %v348 = vstv %s345
        %v349 = vadd.s32 %v348, %v347
        %v350 = vcvt.s32.f32 %v349
        %v351 = vrcp.pop 24.0
        %v352 = vmul.f32 %v350, %v351
        %v353 = vfloor.f32 %v352
        %v354 = vmul.f32 %v353, 24.0
        %v355 = vsub.f32 %v350, %v354
        %v356 = vmul.f32 %v355, 2.0
        %v357 = vadd.f32 %v356, 1.0
        %v358 = vmul.f32 %v357, %v351
        %v359 = vsub.f32 %v358, 1.0
        %v360 = vmul.f32 %v353, 2.0
        %v361 = vadd.f32 %v360, 1.0
        %v362 = vrcp.pop 16.0
        %v363 = vmul.f32 %v361, %v362
        %v364 = vsub.f32 %v363, 1.0
        %v365 = vmul.f32 %v240, %v359
        %v366 = vmul.f32 %v344, %v364
        %v367 = vsub.f32 %v365, %v366
        %v368 = vmul.f32 %v344, %v359
        %v369 = vmul.f32 %v240, %v364
        %v370 = vadd.f32 %v368, %v369
        %v371 = vadd.f32 %v367, 1.0
        %v372 = vmul.f32 %v371, 24.0
        %v373 = vsub.f32 %v372, 1.0
        %v374 = vmul.f32 %v373, 0.5
        %v375 = vadd.f32 %v370, 1.0
        %v376 = vmul.f32 %v375, 16.0
        %v377 = vsub.f32 %v376, 1.0
        %v378 = vmul.f32 %v377, 0.5
        %v379 = vfloor.f32 %v374
        %v380 = vfloor.f32 %v378
        %v381 = vsub.f32 %v374, %v379
        %v382 = vsub.f32 %v378, %v380
        %v383 = vcvt.f32.s32.to.zero.pseudo %v379
        %v384 = vcvt.f32.s32.to.zero.pseudo %v380
        %v385 = vsub.f32 1.0, %v381
        %v386 = vsub.f32 1.0, %v382
        %v387 = vmul.f32 %v385, %v386
        %vm388 = vcmp.ge.s32.totalorder %v383, 0
        %vm389 = vcmp.lt.s32.totalorder %v383, 24
        %vm390 = vmand %vm388, %vm389
        %vm391 = vcmp.ge.s32.totalorder %v384, 0
        %vm392 = vmand %vm390, %vm391
        %vm393 = vcmp.lt.s32.totalorder %v384, 16
        %vm394 = vmand %vm392, %vm393
        %v395 = vsel %vm394, %v387, 0.0
        %v396 = vadd.s32 %v383, 1
        %v397 = vmul.f32 %v381, %v386
        %vm398 = vcmp.ge.s32.totalorder %v396, 0
        %vm399 = vcmp.lt.s32.totalorder %v396, 24
        %vm400 = vmand %vm398, %vm399
        %vm401 = vmand %vm400, %vm391
        %vm402 = vmand %vm401, %vm393
        %v403 = vsel %vm402, %v397, 0.0
        %v404 = vadd.s32 %v384, 1
        %v405 = vmul.f32 %v385, %v382
        %vm406 = vcmp.ge.s32.totalorder %v404, 0
        %vm407 = vmand %vm390, %vm406
        %vm408 = vcmp.lt.s32.totalorder %v404, 16
        %vm409 = vmand %vm407, %vm408
        %v410 = vsel %vm409, %v405, 0.0
        %v411 = vmul.f32 %v381, %v382
        %vm412 = vmand %vm400, %vm406
        %vm413 = vmand %vm412, %vm408
        %v414 = vsel %vm413, %v411, 0.0
        %v415 = vmul.u32 %v384, 24
        %v416 = vadd.s32 %v415, %v383
        %vm417 = vcmp.lt.s32.totalorder %v416, 0
        %v418 = vadd.s32 %v416, 384
        %v419 = vsel %vm417, %v418, %v416
        %vm420 = vcmp.ge.s32.totalorder %v419, 384
        %v421 = vsub.s32 %v419, 384
        %v422 = vsel %vm420, %v421, %v419
        %v423 = vlaneseq
        %v424 = vshrl.u32 %v423, 7
        %v425 = vadd.s32 %v424, 8
        %v426 = vadd.s32 %v424, 16
        %v427 = vadd.s32 %v424, 24
        %v428 = vadd.s32 %v424, 32
        %v429 = vadd.s32 %v424, 40
        %v430 = vadd.s32 %v424, 48
        %v431 = vadd.s32 %v424, 56
        %v432 = vadd.s32 %v424, 64
        %v433 = vadd.s32 %v424, 72
        %v434 = vadd.s32 %v424, 80
        %v435 = vadd.s32 %v424, 88
        %v436 = vadd.s32 %v424, 96
        %v437 = vadd.s32 %v424, 104
        %v438 = vadd.s32 %v424, 112
        %v439 = vadd.s32 %v424, 120
        %v440 = vadd.s32 %v424, 128
        %v441 = vadd.s32 %v424, 136
        %v442 = vadd.s32 %v424, 144
        %v443 = vadd.s32 %v424, 152
        %v444 = vadd.s32 %v424, 160
        %v445 = vadd.s32 %v424, 168
        %v446 = vadd.s32 %v424, 176
        %v447 = vadd.s32 %v424, 184
        %v448 = vadd.s32 %v424, 192
        %v449 = vadd.s32 %v424, 200
        %v450 = vadd.s32 %v424, 208
        %v451 = vadd.s32 %v424, 216
        %v452 = vadd.s32 %v424, 224
        %v453 = vadd.s32 %v424, 232
        %v454 = vadd.s32 %v424, 240
        %v455 = vadd.s32 %v424, 248
        %v456 = vadd.s32 %v424, 256
        %v457 = vadd.s32 %v424, 264
        %v458 = vadd.s32 %v424, 272
        %v459 = vadd.s32 %v424, 280
        %v460 = vadd.s32 %v424, 288
        %v461 = vadd.s32 %v424, 296
        %v462 = vadd.s32 %v424, 304
        %v463 = vadd.s32 %v424, 312
        %v464 = vadd.s32 %v424, 320
        %v465 = vadd.s32 %v424, 328
        %v466 = vadd.s32 %v424, 336
        %v467 = vadd.s32 %v424, 344
        %v468 = vadd.s32 %v424, 352
        %v469 = vadd.s32 %v424, 360
        %v470 = vadd.s32 %v424, 368
        %v471 = vadd.s32 %v424, 376
        %vm472 = vcmp.eq.s32.totalorder %v424, %v422
        %vm473 = vcmp.eq.s32.totalorder %v425, %v422
        %vm474 = vcmp.eq.s32.totalorder %v426, %v422
        %vm475 = vcmp.eq.s32.totalorder %v427, %v422
        %vm476 = vcmp.eq.s32.totalorder %v428, %v422
        %vm477 = vcmp.eq.s32.totalorder %v429, %v422
        %vm478 = vcmp.eq.s32.totalorder %v430, %v422
        %vm479 = vcmp.eq.s32.totalorder %v431, %v422
        %vm480 = vcmp.eq.s32.totalorder %v432, %v422
        %vm481 = vcmp.eq.s32.totalorder %v433, %v422
        %vm482 = vcmp.eq.s32.totalorder %v434, %v422
        %vm483 = vcmp.eq.s32.totalorder %v435, %v422
        %vm484 = vcmp.eq.s32.totalorder %v436, %v422
        %vm485 = vcmp.eq.s32.totalorder %v437, %v422
        %vm486 = vcmp.eq.s32.totalorder %v438, %v422
        %vm487 = vcmp.eq.s32.totalorder %v439, %v422
        %vm488 = vcmp.eq.s32.totalorder %v440, %v422
        %vm489 = vcmp.eq.s32.totalorder %v441, %v422
        %vm490 = vcmp.eq.s32.totalorder %v442, %v422
        %vm491 = vcmp.eq.s32.totalorder %v443, %v422
        %vm492 = vcmp.eq.s32.totalorder %v444, %v422
        %vm493 = vcmp.eq.s32.totalorder %v445, %v422
        %vm494 = vcmp.eq.s32.totalorder %v446, %v422
        %vm495 = vcmp.eq.s32.totalorder %v447, %v422
        %vm496 = vcmp.eq.s32.totalorder %v448, %v422
        %vm497 = vcmp.eq.s32.totalorder %v449, %v422
        %vm498 = vcmp.eq.s32.totalorder %v450, %v422
        %vm499 = vcmp.eq.s32.totalorder %v451, %v422
        %vm500 = vcmp.eq.s32.totalorder %v452, %v422
        %vm501 = vcmp.eq.s32.totalorder %v453, %v422
        %vm502 = vcmp.eq.s32.totalorder %v454, %v422
        %vm503 = vcmp.eq.s32.totalorder %v455, %v422
        %vm504 = vcmp.eq.s32.totalorder %v456, %v422
        %vm505 = vcmp.eq.s32.totalorder %v457, %v422
        %vm506 = vcmp.eq.s32.totalorder %v458, %v422
        %vm507 = vcmp.eq.s32.totalorder %v459, %v422
        %vm508 = vcmp.eq.s32.totalorder %v460, %v422
        %vm509 = vcmp.eq.s32.totalorder %v461, %v422
        %vm510 = vcmp.eq.s32.totalorder %v462, %v422
        %vm511 = vcmp.eq.s32.totalorder %v463, %v422
        %vm512 = vcmp.eq.s32.totalorder %v464, %v422
        %vm513 = vcmp.eq.s32.totalorder %v465, %v422
        %vm514 = vcmp.eq.s32.totalorder %v466, %v422
        %vm515 = vcmp.eq.s32.totalorder %v467, %v422
        %vm516 = vcmp.eq.s32.totalorder %v468, %v422
        %vm517 = vcmp.eq.s32.totalorder %v469, %v422
        %vm518 = vcmp.eq.s32.totalorder %v470, %v422
        %vm519 = vcmp.eq.s32.totalorder %v471, %v422
        %v520 = vsel %vm472, 1.0, 0.0
        %v521 = vsel %vm473, 1.0, 0.0
        %v522 = vsel %vm474, 1.0, 0.0
        %v523 = vsel %vm475, 1.0, 0.0
        %v524 = vsel %vm476, 1.0, 0.0
        %v525 = vsel %vm477, 1.0, 0.0
        %v526 = vsel %vm478, 1.0, 0.0
        %v527 = vsel %vm479, 1.0, 0.0
        %v528 = vsel %vm480, 1.0, 0.0
        %v529 = vsel %vm481, 1.0, 0.0
        %v530 = vsel %vm482, 1.0, 0.0
        %v531 = vsel %vm483, 1.0, 0.0
        %v532 = vsel %vm484, 1.0, 0.0
        %v533 = vsel %vm485, 1.0, 0.0
        %v534 = vsel %vm486, 1.0, 0.0
        %v535 = vsel %vm487, 1.0, 0.0
        %v536 = vsel %vm488, 1.0, 0.0
        %v537 = vsel %vm489, 1.0, 0.0
        %v538 = vsel %vm490, 1.0, 0.0
        %v539 = vsel %vm491, 1.0, 0.0
        %v540 = vsel %vm492, 1.0, 0.0
        %v541 = vsel %vm493, 1.0, 0.0
        %v542 = vsel %vm494, 1.0, 0.0
        %v543 = vsel %vm495, 1.0, 0.0
        %v544 = vsel %vm496, 1.0, 0.0
        %v545 = vsel %vm497, 1.0, 0.0
        %v546 = vsel %vm498, 1.0, 0.0
        %v547 = vsel %vm499, 1.0, 0.0
        %v548 = vsel %vm500, 1.0, 0.0
        %v549 = vsel %vm501, 1.0, 0.0
        %v550 = vsel %vm502, 1.0, 0.0
        %v551 = vsel %vm503, 1.0, 0.0
        %v552 = vsel %vm504, 1.0, 0.0
        %v553 = vsel %vm505, 1.0, 0.0
        %v554 = vsel %vm506, 1.0, 0.0
        %v555 = vsel %vm507, 1.0, 0.0
        %v556 = vsel %vm508, 1.0, 0.0
        %v557 = vsel %vm509, 1.0, 0.0
        %v558 = vsel %vm510, 1.0, 0.0
        %v559 = vsel %vm511, 1.0, 0.0
        %v560 = vsel %vm512, 1.0, 0.0
        %v561 = vsel %vm513, 1.0, 0.0
        %v562 = vsel %vm514, 1.0, 0.0
        %v563 = vsel %vm515, 1.0, 0.0
        %v564 = vsel %vm516, 1.0, 0.0
        %v565 = vsel %vm517, 1.0, 0.0
        %v566 = vsel %vm518, 1.0, 0.0
        %v567 = vsel %vm519, 1.0, 0.0
        %v568 = vmul.f32 %v520, %v395
        %v569 = vmul.f32 %v521, %v395
        %v570 = vmul.f32 %v522, %v395
        %v571 = vmul.f32 %v523, %v395
        %v572 = vmul.f32 %v524, %v395
        %v573 = vmul.f32 %v525, %v395
        %v574 = vmul.f32 %v526, %v395
        %v575 = vmul.f32 %v527, %v395
        %v576 = vmul.f32 %v528, %v395
        %v577 = vmul.f32 %v529, %v395
        %v578 = vmul.f32 %v530, %v395
        %v579 = vmul.f32 %v531, %v395
        %v580 = vmul.f32 %v532, %v395
        %v581 = vmul.f32 %v533, %v395
        %v582 = vmul.f32 %v534, %v395
        %v583 = vmul.f32 %v535, %v395
        %v584 = vmul.f32 %v536, %v395
        %v585 = vmul.f32 %v537, %v395
        %v586 = vmul.f32 %v538, %v395
        %v587 = vmul.f32 %v539, %v395
        %v588 = vmul.f32 %v540, %v395
        %v589 = vmul.f32 %v541, %v395
        %v590 = vmul.f32 %v542, %v395
        %v591 = vmul.f32 %v543, %v395
        %v592 = vmul.f32 %v544, %v395
        %v593 = vmul.f32 %v545, %v395
        %v594 = vmul.f32 %v546, %v395
        %v595 = vmul.f32 %v547, %v395
        %v596 = vmul.f32 %v548, %v395
        %v597 = vmul.f32 %v549, %v395
        %v598 = vmul.f32 %v550, %v395
        %v599 = vmul.f32 %v551, %v395
        %v600 = vmul.f32 %v552, %v395
        %v601 = vmul.f32 %v553, %v395
        %v602 = vmul.f32 %v554, %v395
        %v603 = vmul.f32 %v555, %v395
        %v604 = vmul.f32 %v556, %v395
        %v605 = vmul.f32 %v557, %v395
        %v606 = vmul.f32 %v558, %v395
        %v607 = vmul.f32 %v559, %v395
        %v608 = vmul.f32 %v560, %v395
        %v609 = vmul.f32 %v561, %v395
        %v610 = vmul.f32 %v562, %v395
        %v611 = vmul.f32 %v563, %v395
        %v612 = vmul.f32 %v564, %v395
        %v613 = vmul.f32 %v565, %v395
        %v614 = vmul.f32 %v566, %v395
        %v615 = vmul.f32 %v567, %v395
        %v616 = vrot.slane %v520, 7
        %v617 = vrot.slane %v521, 7
        %v618 = vrot.slane %v522, 7
        %v619 = vrot.slane %v523, 7
        %v620 = vrot.slane %v524, 7
        %v621 = vrot.slane %v525, 7
        %v622 = vrot.slane %v526, 7
        %v623 = vrot.slane %v527, 7
        %v624 = vrot.slane %v528, 7
        %v625 = vrot.slane %v529, 7
        %v626 = vrot.slane %v530, 7
        %v627 = vrot.slane %v531, 7
        %v628 = vrot.slane %v532, 7
        %v629 = vrot.slane %v533, 7
        %v630 = vrot.slane %v534, 7
        %v631 = vrot.slane %v535, 7
        %v632 = vrot.slane %v536, 7
        %v633 = vrot.slane %v537, 7
        %v634 = vrot.slane %v538, 7
        %v635 = vrot.slane %v539, 7
        %v636 = vrot.slane %v540, 7
        %v637 = vrot.slane %v541, 7
        %v638 = vrot.slane %v542, 7
        %v639 = vrot.slane %v543, 7
        %v640 = vrot.slane %v544, 7
        %v641 = vrot.slane %v545, 7
        %v642 = vrot.slane %v546, 7
        %v643 = vrot.slane %v547, 7
        %v644 = vrot.slane %v548, 7
        %v645 = vrot.slane %v549, 7
        %v646 = vrot.slane %v550, 7
        %v647 = vrot.slane %v551, 7
        %v648 = vrot.slane %v552, 7
        %v649 = vrot.slane %v553, 7
        %v650 = vrot.slane %v554, 7
        %v651 = vrot.slane %v555, 7
        %v652 = vrot.slane %v556, 7
        %v653 = vrot.slane %v557, 7
        %v654 = vrot.slane %v558, 7
        %v655 = vrot.slane %v559, 7
        %v656 = vrot.slane %v560, 7
        %v657 = vrot.slane %v561, 7
        %v658 = vrot.slane %v562, 7
        %v659 = vrot.slane %v563, 7
        %v660 = vrot.slane %v564, 7
        %v661 = vrot.slane %v565, 7
        %v662 = vrot.slane %v566, 7
        %v663 = vrot.slane %v567, 7
        %vm664 = vcmp.lt.s32.totalorder %v424, 1
        %v665 = vsel %vm664, %v662, %v663
        %v666 = vsel %vm664, %v661, %v662
        %v667 = vsel %vm664, %v660, %v661
        %v668 = vsel %vm664, %v659, %v660
        %v669 = vsel %vm664, %v658, %v659
        %v670 = vsel %vm664, %v657, %v658
        %v671 = vsel %vm664, %v656, %v657
        %v672 = vsel %vm664, %v655, %v656
        %v673 = vsel %vm664, %v654, %v655
        %v674 = vsel %vm664, %v653, %v654
        %v675 = vsel %vm664, %v652, %v653
        %v676 = vsel %vm664, %v651, %v652
        %v677 = vsel %vm664, %v650, %v651
        %v678 = vsel %vm664, %v649, %v650
        %v679 = vsel %vm664, %v648, %v649
        %v680 = vsel %vm664, %v647, %v648
        %v681 = vsel %vm664, %v646, %v647
        %v682 = vsel %vm664, %v645, %v646
        %v683 = vsel %vm664, %v644, %v645
        %v684 = vsel %vm664, %v643, %v644
        %v685 = vsel %vm664, %v642, %v643
        %v686 = vsel %vm664, %v641, %v642
        %v687 = vsel %vm664, %v640, %v641
        %v688 = vsel %vm664, %v639, %v640
        %v689 = vsel %vm664, %v638, %v639
        %v690 = vsel %vm664, %v637, %v638
        %v691 = vsel %vm664, %v636, %v637
        %v692 = vsel %vm664, %v635, %v636
        %v693 = vsel %vm664, %v634, %v635
        %v694 = vsel %vm664, %v633, %v634
        %v695 = vsel %vm664, %v632, %v633
        %v696 = vsel %vm664, %v631, %v632
        %v697 = vsel %vm664, %v630, %v631
        %v698 = vsel %vm664, %v629, %v630
        %v699 = vsel %vm664, %v628, %v629
        %v700 = vsel %vm664, %v627, %v628
        %v701 = vsel %vm664, %v626, %v627
        %v702 = vsel %vm664, %v625, %v626
        %v703 = vsel %vm664, %v624, %v625
        %v704 = vsel %vm664, %v623, %v624
        %v705 = vsel %vm664, %v622, %v623
        %v706 = vsel %vm664, %v621, %v622
        %v707 = vsel %vm664, %v620, %v621
        %v708 = vsel %vm664, %v619, %v620
        %v709 = vsel %vm664, %v618, %v619
        %v710 = vsel %vm664, %v617, %v618
        %v711 = vsel %vm664, %v616, %v617
        %v712 = vsel %vm664, %v663, %v616
        %v713 = vmul.f32 %v712, %v403
        %v714 = vmul.f32 %v711, %v403
        %v715 = vmul.f32 %v710, %v403
        %v716 = vmul.f32 %v709, %v403
        %v717 = vmul.f32 %v708, %v403
        %v718 = vmul.f32 %v707, %v403
        %v719 = vmul.f32 %v706, %v403
        %v720 = vmul.f32 %v705, %v403
        %v721 = vmul.f32 %v704, %v403
        %v722 = vmul.f32 %v703, %v403
        %v723 = vmul.f32 %v702, %v403
        %v724 = vmul.f32 %v701, %v403
        %v725 = vmul.f32 %v700, %v403
        %v726 = vmul.f32 %v699, %v403
        %v727 = vmul.f32 %v698, %v403
        %v728 = vmul.f32 %v697, %v403
        %v729 = vmul.f32 %v696, %v403
        %v730 = vmul.f32 %v695, %v403
        %v731 = vmul.f32 %v694, %v403
        %v732 = vmul.f32 %v693, %v403
        %v733 = vmul.f32 %v692, %v403
        %v734 = vmul.f32 %v691, %v403
        %v735 = vmul.f32 %v690, %v403
        %v736 = vmul.f32 %v689, %v403
        %v737 = vmul.f32 %v688, %v403
        %v738 = vmul.f32 %v687, %v403
        %v739 = vmul.f32 %v686, %v403
        %v740 = vmul.f32 %v685, %v403
        %v741 = vmul.f32 %v684, %v403
        %v742 = vmul.f32 %v683, %v403
        %v743 = vmul.f32 %v682, %v403
        %v744 = vmul.f32 %v681, %v403
        %v745 = vmul.f32 %v680, %v403
        %v746 = vmul.f32 %v679, %v403
        %v747 = vmul.f32 %v678, %v403
        %v748 = vmul.f32 %v677, %v403
        %v749 = vmul.f32 %v676, %v403
        %v750 = vmul.f32 %v675, %v403
        %v751 = vmul.f32 %v674, %v403
        %v752 = vmul.f32 %v673, %v403
        %v753 = vmul.f32 %v672, %v403
        %v754 = vmul.f32 %v671, %v403
        %v755 = vmul.f32 %v670, %v403
        %v756 = vmul.f32 %v669, %v403
        %v757 = vmul.f32 %v668, %v403
        %v758 = vmul.f32 %v667, %v403
        %v759 = vmul.f32 %v666, %v403
        %v760 = vmul.f32 %v665, %v403
        %v761 = vadd.f32 %v568, %v713
        %v762 = vadd.f32 %v569, %v714
        %v763 = vadd.f32 %v570, %v715
        %v764 = vadd.f32 %v571, %v716
        %v765 = vadd.f32 %v572, %v717
        %v766 = vadd.f32 %v573, %v718
        %v767 = vadd.f32 %v574, %v719
        %v768 = vadd.f32 %v575, %v720
        %v769 = vadd.f32 %v576, %v721
        %v770 = vadd.f32 %v577, %v722
        %v771 = vadd.f32 %v578, %v723
        %v772 = vadd.f32 %v579, %v724
        %v773 = vadd.f32 %v580, %v725
        %v774 = vadd.f32 %v581, %v726
        %v775 = vadd.f32 %v582, %v727
        %v776 = vadd.f32 %v583, %v728
        %v777 = vadd.f32 %v584, %v729
        %v778 = vadd.f32 %v585, %v730
        %v779 = vadd.f32 %v586, %v731
        %v780 = vadd.f32 %v587, %v732
        %v781 = vadd.f32 %v588, %v733
        %v782 = vadd.f32 %v589, %v734
        %v783 = vadd.f32 %v590, %v735
        %v784 = vadd.f32 %v591, %v736
        %v785 = vadd.f32 %v592, %v737
        %v786 = vadd.f32 %v593, %v738
        %v787 = vadd.f32 %v594, %v739
        %v788 = vadd.f32 %v595, %v740
        %v789 = vadd.f32 %v596, %v741
        %v790 = vadd.f32 %v597, %v742
        %v791 = vadd.f32 %v598, %v743
        %v792 = vadd.f32 %v599, %v744
        %v793 = vadd.f32 %v600, %v745
        %v794 = vadd.f32 %v601, %v746
        %v795 = vadd.f32 %v602, %v747
        %v796 = vadd.f32 %v603, %v748
        %v797 = vadd.f32 %v604, %v749
        %v798 = vadd.f32 %v605, %v750
        %v799 = vadd.f32 %v606, %v751
        %v800 = vadd.f32 %v607, %v752
        %v801 = vadd.f32 %v608, %v753
        %v802 = vadd.f32 %v609, %v754
        %v803 = vadd.f32 %v610, %v755
        %v804 = vadd.f32 %v611, %v756
        %v805 = vadd.f32 %v612, %v757
        %v806 = vadd.f32 %v613, %v758
        %v807 = vadd.f32 %v614, %v759
        %v808 = vadd.f32 %v615, %v760
        %v809 = vmul.f32 %v565, %v410
        %v810 = vmul.f32 %v566, %v410
        %v811 = vmul.f32 %v567, %v410
        %v812 = vmul.f32 %v520, %v410
        %v813 = vmul.f32 %v521, %v410
        %v814 = vmul.f32 %v522, %v410
        %v815 = vmul.f32 %v523, %v410
        %v816 = vmul.f32 %v524, %v410
        %v817 = vmul.f32 %v525, %v410
        %v818 = vmul.f32 %v526, %v410
        %v819 = vmul.f32 %v527, %v410
        %v820 = vmul.f32 %v528, %v410
        %v821 = vmul.f32 %v529, %v410
        %v822 = vmul.f32 %v530, %v410
        %v823 = vmul.f32 %v531, %v410
        %v824 = vmul.f32 %v532, %v410
        %v825 = vmul.f32 %v533, %v410
        %v826 = vmul.f32 %v534, %v410
        %v827 = vmul.f32 %v535, %v410
        %v828 = vmul.f32 %v536, %v410
        %v829 = vmul.f32 %v537, %v410
        %v830 = vmul.f32 %v538, %v410
        %v831 = vmul.f32 %v539, %v410
        %v832 = vmul.f32 %v540, %v410
        %v833 = vmul.f32 %v541, %v410
        %v834 = vmul.f32 %v542, %v410
        %v835 = vmul.f32 %v543, %v410
        %v836 = vmul.f32 %v544, %v410
        %v837 = vmul.f32 %v545, %v410
        %v838 = vmul.f32 %v546, %v410
        %v839 = vmul.f32 %v547, %v410
        %v840 = vmul.f32 %v548, %v410
        %v841 = vmul.f32 %v549, %v410
        %v842 = vmul.f32 %v550, %v410
        %v843 = vmul.f32 %v551, %v410
        %v844 = vmul.f32 %v552, %v410
        %v845 = vmul.f32 %v553, %v410
        %v846 = vmul.f32 %v554, %v410
        %v847 = vmul.f32 %v555, %v410
        %v848 = vmul.f32 %v556, %v410
        %v849 = vmul.f32 %v557, %v410
        %v850 = vmul.f32 %v558, %v410
        %v851 = vmul.f32 %v559, %v410
        %v852 = vmul.f32 %v560, %v410
        %v853 = vmul.f32 %v561, %v410
        %v854 = vmul.f32 %v562, %v410
        %v855 = vmul.f32 %v563, %v410
        %v856 = vmul.f32 %v564, %v410
        %v857 = vadd.f32 %v761, %v809
        %v858 = vadd.f32 %v762, %v810
        %v859 = vadd.f32 %v763, %v811
        %v860 = vadd.f32 %v764, %v812
        %v861 = vadd.f32 %v765, %v813
        %v862 = vadd.f32 %v766, %v814
        %v863 = vadd.f32 %v767, %v815
        %v864 = vadd.f32 %v768, %v816
        %v865 = vadd.f32 %v769, %v817
        %v866 = vadd.f32 %v770, %v818
        %v867 = vadd.f32 %v771, %v819
        %v868 = vadd.f32 %v772, %v820
        %v869 = vadd.f32 %v773, %v821
        %v870 = vadd.f32 %v774, %v822
        %v871 = vadd.f32 %v775, %v823
        %v872 = vadd.f32 %v776, %v824
        %v873 = vadd.f32 %v777, %v825
        %v874 = vadd.f32 %v778, %v826
        %v875 = vadd.f32 %v779, %v827
        %v876 = vadd.f32 %v780, %v828
        %v877 = vadd.f32 %v781, %v829
        %v878 = vadd.f32 %v782, %v830
        %v879 = vadd.f32 %v783, %v831
        %v880 = vadd.f32 %v784, %v832
        %v881 = vadd.f32 %v785, %v833
        %v882 = vadd.f32 %v786, %v834
        %v883 = vadd.f32 %v787, %v835
        %v884 = vadd.f32 %v788, %v836
        %v885 = vadd.f32 %v789, %v837
        %v886 = vadd.f32 %v790, %v838
        %v887 = vadd.f32 %v791, %v839
        %v888 = vadd.f32 %v792, %v840
        %v889 = vadd.f32 %v793, %v841
        %v890 = vadd.f32 %v794, %v842
        %v891 = vadd.f32 %v795, %v843
        %v892 = vadd.f32 %v796, %v844
        %v893 = vadd.f32 %v797, %v845
        %v894 = vadd.f32 %v798, %v846
        %v895 = vadd.f32 %v799, %v847
        %v896 = vadd.f32 %v800, %v848
        %v897 = vadd.f32 %v801, %v849
        %v898 = vadd.f32 %v802, %v850
        %v899 = vadd.f32 %v803, %v851
        %v900 = vadd.f32 %v804, %v852
        %v901 = vadd.f32 %v805, %v853
        %v902 = vadd.f32 %v806, %v854
        %v903 = vadd.f32 %v807, %v855
        %v904 = vadd.f32 %v808, %v856
        %v905 = vmul.f32 %v667, %v414
        %v906 = vmul.f32 %v666, %v414
        %v907 = vmul.f32 %v665, %v414
        %v908 = vmul.f32 %v712, %v414
        %v909 = vmul.f32 %v711, %v414
        %v910 = vmul.f32 %v710, %v414
        %v911 = vmul.f32 %v709, %v414
        %v912 = vmul.f32 %v708, %v414
        %v913 = vmul.f32 %v707, %v414
        %v914 = vmul.f32 %v706, %v414
        %v915 = vmul.f32 %v705, %v414
        %v916 = vmul.f32 %v704, %v414
        %v917 = vmul.f32 %v703, %v414
        %v918 = vmul.f32 %v702, %v414
        %v919 = vmul.f32 %v701, %v414
        %v920 = vmul.f32 %v700, %v414
        %v921 = vmul.f32 %v699, %v414
        %v922 = vmul.f32 %v698, %v414
        %v923 = vmul.f32 %v697, %v414
        %v924 = vmul.f32 %v696, %v414
        %v925 = vmul.f32 %v695, %v414
        %v926 = vmul.f32 %v694, %v414
        %v927 = vmul.f32 %v693, %v414
        %v928 = vmul.f32 %v692, %v414
        %v929 = vmul.f32 %v691, %v414
        %v930 = vmul.f32 %v690, %v414
        %v931 = vmul.f32 %v689, %v414
        %v932 = vmul.f32 %v688, %v414
        %v933 = vmul.f32 %v687, %v414
        %v934 = vmul.f32 %v686, %v414
        %v935 = vmul.f32 %v685, %v414
        %v936 = vmul.f32 %v684, %v414
        %v937 = vmul.f32 %v683, %v414
        %v938 = vmul.f32 %v682, %v414
        %v939 = vmul.f32 %v681, %v414
        %v940 = vmul.f32 %v680, %v414
        %v941 = vmul.f32 %v679, %v414
        %v942 = vmul.f32 %v678, %v414
        %v943 = vmul.f32 %v677, %v414
        %v944 = vmul.f32 %v676, %v414
        %v945 = vmul.f32 %v675, %v414
        %v946 = vmul.f32 %v674, %v414
        %v947 = vmul.f32 %v673, %v414
        %v948 = vmul.f32 %v672, %v414
        %v949 = vmul.f32 %v671, %v414
        %v950 = vmul.f32 %v670, %v414
        %v951 = vmul.f32 %v669, %v414
        %v952 = vmul.f32 %v668, %v414
        %v953 = vadd.f32 %v857, %v905
        %v954 = vadd.f32 %v858, %v906
        %v955 = vadd.f32 %v859, %v907
        %v956 = vadd.f32 %v860, %v908
        %v957 = vadd.f32 %v861, %v909
        %v958 = vadd.f32 %v862, %v910
        %v959 = vadd.f32 %v863, %v911
        %v960 = vadd.f32 %v864, %v912
        %v961 = vadd.f32 %v865, %v913
        %v962 = vadd.f32 %v866, %v914
        %v963 = vadd.f32 %v867, %v915
        %v964 = vadd.f32 %v868, %v916
        %v965 = vadd.f32 %v869, %v917
        %v966 = vadd.f32 %v870, %v918
        %v967 = vadd.f32 %v871, %v919
        %v968 = vadd.f32 %v872, %v920
        %v969 = vadd.f32 %v873, %v921
        %v970 = vadd.f32 %v874, %v922
        %v971 = vadd.f32 %v875, %v923
        %v972 = vadd.f32 %v876, %v924
        %v973 = vadd.f32 %v877, %v925
        %v974 = vadd.f32 %v878, %v926
        %v975 = vadd.f32 %v879, %v927
        %v976 = vadd.f32 %v880, %v928
        %v977 = vadd.f32 %v881, %v929
        %v978 = vadd.f32 %v882, %v930
        %v979 = vadd.f32 %v883, %v931
        %v980 = vadd.f32 %v884, %v932
        %v981 = vadd.f32 %v885, %v933
        %v982 = vadd.f32 %v886, %v934
        %v983 = vadd.f32 %v887, %v935
        %v984 = vadd.f32 %v888, %v936
        %v985 = vadd.f32 %v889, %v937
        %v986 = vadd.f32 %v890, %v938
        %v987 = vadd.f32 %v891, %v939
        %v988 = vadd.f32 %v892, %v940
        %v989 = vadd.f32 %v893, %v941
        %v990 = vadd.f32 %v894, %v942
        %v991 = vadd.f32 %v895, %v943
        %v992 = vadd.f32 %v896, %v944
        %v993 = vadd.f32 %v897, %v945
        %v994 = vadd.f32 %v898, %v946
        %v995 = vadd.f32 %v899, %v947
        %v996 = vadd.f32 %v900, %v948
        %v997 = vadd.f32 %v901, %v949
        %v998 = vadd.f32 %v902, %v950
        %v999 = vadd.f32 %v903, %v951
        %v1000 = vadd.f32 %v904, %v952
        %v1001 = vld [vmem:[#allocation3] sm:$0x3f]
        %v1003 = vcombine.high %v1001, %v1001
        %v1005 = vunpack.c.l.s4 1983009808
        %v1006 = vunpack.c.0.s8 %v1005
        %v1007 = vlaneseq
        %v1008 = vshrl.u32 %v1007, 7
        %v1009 = vsub.s32 %v1006, %v1008
        %v1010 = vrot.slane %v1001, %v1009
        %v1012 = vunpack.c.l.s4 1983009808
        %v1013 = vunpack.c.0.s8 %v1012
        %v1014 = vlaneseq
        %v1015 = vshrl.u32 %v1014, 7
        %v1016 = vsub.s32 %v1013, %v1015
        %v1017 = vrot.slane %v1003, %v1016
        %v1018 = vcombine.high %v1010, %v1010
        %1022 = vmatprep.subr.mxu0 0.0
        %1023 = vmatpush1.msra.mxu0 %v953
        %1024 = vmatprep.subr.mxu0 0.0
        %1025 = vmatpush1.msra.mxu0 %v954
        %1026 = vmatprep.subr.mxu0 0.0
        %1027 = vmatpush1.msra.mxu0 %v955
        %1028 = vmatprep.subr.mxu0 0.0
        %1029 = vmatpush1.msra.mxu0 %v956
        %1030 = vmatprep.subr.mxu0 0.0
        %1031 = vmatpush1.msra.mxu0 %v957
        %1032 = vmatprep.subr.mxu0 0.0
        %1033 = vmatpush1.msra.mxu0 %v958
        %1034 = vmatprep.subr.mxu0 0.0
        %1035 = vmatpush1.msra.mxu0 %v959
        %1036 = vmatprep.subr.mxu0 0.0
        %1037 = vmatpush1.msra.mxu0 %v960
        %1038 = vmatprep.subr.mxu0 0.0
        %1039 = vmatpush1.msra.mxu0 %v961
        %1040 = vmatprep.subr.mxu0 0.0
        %1041 = vmatpush1.msra.mxu0 %v962
        %1042 = vmatprep.subr.mxu0 0.0
        %1043 = vmatpush1.msra.mxu0 %v963
        %1044 = vmatprep.subr.mxu0 0.0
        %1045 = vmatpush1.msra.mxu0 %v964
        %1046 = vmatprep.subr.mxu0 0.0
        %1047 = vmatpush1.msra.mxu0 %v965
        %1048 = vmatprep.subr.mxu0 0.0
        %1049 = vmatpush1.msra.mxu0 %v966
        %1050 = vmatprep.subr.mxu0 0.0
        %1051 = vmatpush1.msra.mxu0 %v967
        %1052 = vmatprep.subr.mxu0 0.0
        %1053 = vmatpush1.msra.mxu0 %v968
        %1054 = vmatprep.subr.mxu0 0.0
        %1055 = vmatpush1.msra.mxu0 %v969
        %1056 = vmatprep.subr.mxu0 0.0
        %1057 = vmatpush1.msra.mxu0 %v970
        %1058 = vmatprep.subr.mxu0 0.0
        %1059 = vmatpush1.msra.mxu0 %v971
        %1060 = vmatprep.subr.mxu0 0.0
        %1061 = vmatpush1.msra.mxu0 %v972
        %1062 = vmatprep.subr.mxu0 0.0
        %1063 = vmatpush1.msra.mxu0 %v973
        %1064 = vmatprep.subr.mxu0 0.0
        %1065 = vmatpush1.msra.mxu0 %v974
        %1066 = vmatprep.subr.mxu0 0.0
        %1067 = vmatpush1.msra.mxu0 %v975
        %1068 = vmatprep.subr.mxu0 0.0
        %1069 = vmatpush1.msra.mxu0 %v976
        %1070 = vmatprep.subr.mxu0 0.0
        %1071 = vmatpush1.msra.mxu0 %v977
        %1072 = vmatprep.subr.mxu0 0.0
        %1073 = vmatpush1.msra.mxu0 %v978
        %1074 = vmatprep.subr.mxu0 0.0
        %1075 = vmatpush1.msra.mxu0 %v979
        %1076 = vmatprep.subr.mxu0 0.0
        %1077 = vmatpush1.msra.mxu0 %v980
        %1078 = vmatprep.subr.mxu0 0.0
        %1079 = vmatpush1.msra.mxu0 %v981
        %1080 = vmatprep.subr.mxu0 0.0
        %1081 = vmatpush1.msra.mxu0 %v982
        %1082 = vmatprep.subr.mxu0 0.0
        %1083 = vmatpush1.msra.mxu0 %v983
        %1084 = vmatprep.subr.mxu0 0.0
        %1085 = vmatpush1.msra.mxu0 %v984
        %1086 = vmatprep.mubr.f32.mxu0 %v1018
        %1087 = vmatmul.mubr.f32.gmra.mrb[0].mxu0 %v1010
        %v1088 = vpop.f32.mrb[0].mxu0
        %v1089 = vadd.f32 0.0, %v1088
        %v1090 = vpop.f32.mrb[0].mxu0
        %1091 = vdwg.mxu0
        %1092 = vmatprep.subr.mxu0 0.0
        %1093 = vmatpush1.msra.mxu0 %v985
        %1094 = vmatprep.subr.mxu0 0.0
        %1095 = vmatpush1.msra.mxu0 %v986
        %1096 = vmatprep.subr.mxu0 0.0
        %1097 = vmatpush1.msra.mxu0 %v987
        %1098 = vmatprep.subr.mxu0 0.0
        %1099 = vmatpush1.msra.mxu0 %v988
        %1100 = vmatprep.subr.mxu0 0.0
        %1101 = vmatpush1.msra.mxu0 %v989
        %1102 = vmatprep.subr.mxu0 0.0
        %1103 = vmatpush1.msra.mxu0 %v990
        %1104 = vmatprep.subr.mxu0 0.0
        %1105 = vmatpush1.msra.mxu0 %v991
        %1106 = vmatprep.subr.mxu0 0.0
        %1107 = vmatpush1.msra.mxu0 %v992
        %1108 = vmatprep.subr.mxu0 0.0
        %1109 = vmatpush1.msra.mxu0 %v993
        %1110 = vmatprep.subr.mxu0 0.0
        %1111 = vmatpush1.msra.mxu0 %v994
        %1112 = vmatprep.subr.mxu0 0.0
        %1113 = vmatpush1.msra.mxu0 %v995
        %1114 = vmatprep.subr.mxu0 0.0
        %1115 = vmatpush1.msra.mxu0 %v996
        %1116 = vmatprep.subr.mxu0 0.0
        %1117 = vmatpush1.msra.mxu0 %v997
        %1118 = vmatprep.subr.mxu0 0.0
        %1119 = vmatpush1.msra.mxu0 %v998
        %1120 = vmatprep.subr.mxu0 0.0
        %1121 = vmatpush1.msra.mxu0 %v999
        %1122 = vmatprep.subr.mxu0 0.0
        %1123 = vmatpush1.msra.mxu0 %v1000
        %1124 = vmatprep.subr.mxu0 0.0
        %1125 = vmatpush1.msra.mxu0 0.0
        %1126 = vmatprep.subr.mxu0 0.0
        %1127 = vmatpush1.msra.mxu0 0.0
        %1128 = vmatprep.subr.mxu0 0.0
        %1129 = vmatpush1.msra.mxu0 0.0
        %1130 = vmatprep.subr.mxu0 0.0
        %1131 = vmatpush1.msra.mxu0 0.0
        %1132 = vmatprep.subr.mxu0 0.0
        %1133 = vmatpush1.msra.mxu0 0.0
        %1134 = vmatprep.subr.mxu0 0.0
        %1135 = vmatpush1.msra.mxu0 0.0
        %1136 = vmatprep.subr.mxu0 0.0
        %1137 = vmatpush1.msra.mxu0 0.0
        %1138 = vmatprep.subr.mxu0 0.0
        %1139 = vmatpush1.msra.mxu0 0.0
        %1140 = vmatprep.subr.mxu0 0.0
        %1141 = vmatpush1.msra.mxu0 0.0
        %1142 = vmatprep.subr.mxu0 0.0
        %1143 = vmatpush1.msra.mxu0 0.0
        %1144 = vmatprep.subr.mxu0 0.0
        %1145 = vmatpush1.msra.mxu0 0.0
        %1146 = vmatprep.subr.mxu0 0.0
        %1147 = vmatpush1.msra.mxu0 0.0
        %1148 = vmatprep.subr.mxu0 0.0
        %1149 = vmatpush1.msra.mxu0 0.0
        %1150 = vmatprep.subr.mxu0 0.0
        %1151 = vmatpush1.msra.mxu0 0.0
        %1152 = vmatprep.subr.mxu0 0.0
        %1153 = vmatpush1.msra.mxu0 0.0
        %1154 = vmatprep.subr.mxu0 0.0
        %1155 = vmatpush1.msra.mxu0 0.0
        %1156 = vmatprep.mubr.f32.mxu0 0.0
        %1157 = vmatmul.mubr.f32.gmra.mrb[0].mxu0 %v1017
        %v1158 = vpop.f32.mrb[0].mxu0
        %v1159 = vadd.f32 %v1089, %v1158
        %v1160 = vpop.f32.mrb[0].mxu0
        %1161 = vdwg.mxu0
        %1162 = vst [vmem:[%s135] sm:$0x3] %v1159
        %s1163 = sand.u32 %s68, 1
        %s1164 = scalar_lea.sflag [#allocation5], %s1163
        %s1165 = sand.u32 %s68, 1
        %s1166 = smul.addr %s1165, 2
        %s1167 = scalar_lea.vmem [#allocation6], %s1166
        // Predicated region
        $region33: #{tpu_custom_call.1} parent=27 // pred_check
          %p1168 = pneg %p78
        $region34: #{tpu_custom_call.1} parent=27 // pred_check_branch
          %1170 = sbr.rel (%p1168) target = $region36
        $region35: #{tpu_custom_call.1} parent=27 // pred_region
          %s1172 = ssub.s32 32, 32
          %1173 = vsyncadd %s1164, %s1172
          %s1174 = smul.addr %s18, 32
          %s1175 = scalar_lea.hbm %s2, %s1174
          %s1177 = sshll.u32 %s1167, 4
          %s1178 = int_to_ptr.vmem [resolvable:$true] %s1177
          %1180 = dma.vmem_to_hbm [thread:$0]  %s1178, 32, %s1175, %s1164
        $region36: #{tpu_custom_call.1} parent=27 // pred_fallthru
          _
      $region28: #{tpu_custom_call.1} parent=5 // pred_fallthru
        _
      %p1181 = scmp.le.s32.totalorder 2, %s13
      // Predicated region
      $region37: #{tpu_custom_call.1} parent=5 // pred_check
        %p1182 = pneg %p1181
      $region38: #{tpu_custom_call.1} parent=5 // pred_check_branch
        %1184 = sbr.rel (%p1182) target = $region40
      $region39: #{tpu_custom_call.1} parent=5 // pred_region
        %s1185 = ssub.s32 %s13, 2
        // Predicated region
        $region41: #{tpu_custom_call.1} parent=39 // pred_check
          %p1186 = pneg %p84
        $region42: #{tpu_custom_call.1} parent=39 // pred_check_branch
          %1188 = sbr.rel (%p1186) target = $region44
        $region43: #{tpu_custom_call.1} parent=39 // pred_region
          %s1189 = sand.u32 %s69, 1
          %s1190 = scalar_lea.sflag [#allocation5], %s1189
          %s1191 = sand.u32 %s69, 1
          %s1192 = smul.addr %s1191, 2
          %s1193 = scalar_lea.vmem [#allocation6], %s1192
          %1194 = dma.done %s1190, 32
        $region44: #{tpu_custom_call.1} parent=39 // pred_fallthru
          _
      $region40: #{tpu_custom_call.1} parent=5 // pred_fallthru
        _
    $region6: #{tpu_custom_call.1} parent=1 // loop_footer
      %s17 = sadd.s32 1, %s13
    $region7: #{tpu_custom_call.1} parent=1 // loop_footer_branch
      %12 = sbr.rel target = $region3
    $region8: #{tpu_custom_call.1} parent=1 // loop_exit
      _
    %1195 = vsyncpa [#allocation4], 1
    %s1196 = scalar_lea.sflag [#allocation4], 1
    %1197 = vsyncpa %s1196, 1
    %1198 = vsyncpa [#allocation5], 1
    %s1199 = scalar_lea.sflag [#allocation5], 1
    %1200 = vsyncpa %s1199, 1

</llo_original>
